<compile_context>
chip_gen: v7x
topology: tpu7x:2x2x1
jax: 0.10.0
libtpu: 0.0.40
codegen_flags: <defaults>
</compile_context>

<pallas_src>
import functools

import jax
import jax.numpy as jnp
from jax.experimental import pallas as pl
from jax.experimental.pallas import tpu as pltpu

_SUBLANE = 8
_LANE = 128


def _round_up(x, m):
    return (x + m - 1) // m * m


def _vmem_budget_bytes():
    """Per-generation budget for the double-buffered working set."""
    kind = ""
    try:
        kind = jax.devices()[0].device_kind.lower()
    except Exception:
        pass
    if "v6" in kind:
        # 128 MiB physical / 32 MiB scoped default: bigger tiles amortize the
        # ~0.35us per-grid-step overhead (63% -> 86% of HBM roofline).
        return 24 * 1024 * 1024
    # Conservative default: fits v5e (16 MiB scoped default; raised below via
    # vmem_limit_bytes) and v7x (64 MiB physical, 32 MiB scoped default).
    return 12 * 1024 * 1024


def _vmem_bytes(tb, td, itemsize):
    """Accurate VMEM footprint of one pipelined step (all buffers counted)."""
    lane_td = _round_up(td, _LANE)
    lane_tb = _round_up(tb, _LANE)
    in_bytes = 2 * 2 * tb * lane_td * itemsize        # 2 inputs x 2 pipeline bufs
    vec_bytes = 2 * 2 * _SUBLANE * lane_tb * 4        # target + loss (1,1,TB) bufs
    scratch_bytes = _SUBLANE * lane_tb * 4            # (1, TB) f32 accumulator
    return in_bytes + vec_bytes + scratch_bytes


def _plan_tiles(B, D, itemsize, budget, max_d_tile):
    """Pick the batch tile TB, the D tile TD, and the padded D extent."""
    if D > max_d_tile:
        td = _round_up(max_d_tile, _LANE)
        d_padded = _round_up(D, td)
    else:
        td = D
        d_padded = D

    lane_td = _round_up(td, _LANE)
    # Per-row cost: double-buffered input tiles + sublane-padded target/loss
    # blocks + scratch accumulator (5 lane-dense rows of 4 bytes each).
    per_row = 2 * 2 * lane_td * itemsize + 5 * _SUBLANE * 4
    tb = max(budget // per_row, _SUBLANE)
    tb = (tb // _SUBLANE) * _SUBLANE
    tb = min(tb, _round_up(B, _SUBLANE))
    # Keep >= 2 blocks on the "parallel" batch axis when B allows, so both
    # v7x TensorCores get work (harmless elsewhere: one extra ~0.35us step).
    tb = min(tb, max(_SUBLANE, _round_up((B + 1) // 2, _SUBLANE)))
    return tb, td, d_padded


def _contrastive_loss_kernel(o1_ref, o2_ref, t_ref, loss_ref, acc_ref, *,
                             margin, eps):
    j = pl.program_id(1)  # D-tile index ("arbitrary" reduction axis, last)

    @pl.when(j == 0)
    def _init():
        acc_ref[...] = jnp.zeros_like(acc_ref)

    # Native-dtype DMA; upcast to f32 for the math in-kernel.
    o1 = o1_ref[...].astype(jnp.float32)                 # (TB, TD)
    o2 = o2_ref[...].astype(jnp.float32)                 # (TB, TD)
    diff = o2 - o1
    part = jnp.sum(diff * diff, axis=1, keepdims=True)   # (TB, 1)
    # Relayout to the lane axis (XLU) so accumulator / output are lane-dense.
    acc_ref[...] += part.T                               # (1, TB)

    @pl.when(j == pl.num_programs(1) - 1)
    def _finalize():
        d = acc_ref[...]                                 # (1, TB) f32
        hinge = jnp.maximum(margin - jnp.sqrt(d + eps), 0.0)
        t = t_ref[0]                                     # (1, TB) f32
        # Exact linear blend (correct even for soft / fractional targets).
        loss_ref[0] = 0.5 * (t * d + (1.0 - t) * hinge * hinge)


def contrastive_loss(output1, output2, target, *, margin, eps=1e-9,
                     size_average=True, max_d_tile=2048):
    """Pallas equivalent of ContrastiveLoss.forward.

    output1, output2: (B, D) float (any float dtype; math is f32 in-kernel)
    target:           (B,) or (B, 1), 1 = same class, 0 = different
    Returns a scalar float32 (mean over batch if size_average else sum).
    """
    B, D = output1.shape
    itemsize = jnp.dtype(output1.dtype).itemsize
    budget = _vmem_budget_bytes()
    tb, td, d_padded = _plan_tiles(B, D, itemsize, budget, max_d_tile)

    b_padded = _round_up(B, tb)
    nb_b = b_padded // tb
    nb_d = d_padded // td
    pad_b = b_padded - B
    pad_d = d_padded - D

    t_f32 = target.reshape(-1).astype(jnp.float32)
    if pad_b or pad_d:
        # Zero-padded embedding rows/cols contribute 0 to the distance; padded
        # rows get target=1 so their loss is exactly 0 (and we slice them off
        # below anyway).
        output1 = jnp.pad(output1, ((0, pad_b), (0, pad_d)))
        output2 = jnp.pad(output2, ((0, pad_b), (0, pad_d)))
    if pad_b:
        t_f32 = jnp.concatenate([t_f32, jnp.ones((pad_b,), jnp.float32)])
    t_f32 = t_f32.reshape(nb_b, 1, tb)                   # lane-dense layout

    kernel = functools.partial(_contrastive_loss_kernel,
                               margin=float(margin), eps=float(eps))

    footprint = _vmem_bytes(tb, td, itemsize)
    vmem_limit = max(footprint + (8 << 20), 16 << 20)    # footprint + headroom

    cost = pl.CostEstimate(
        flops=int(3 * b_padded * d_padded + 8 * b_padded),
        transcendentals=int(b_padded),
        bytes_accessed=int(2 * b_padded * d_padded * itemsize
                           + 2 * b_padded * 4),
    )

    losses = pl.pallas_call(
        kernel,
        out_shape=jax.ShapeDtypeStruct((nb_b, 1, tb), jnp.float32),
        grid=(nb_b, nb_d),
        in_specs=[
            pl.BlockSpec((tb, td), lambda i, j: (i, j)),
            pl.BlockSpec((tb, td), lambda i, j: (i, j)),
            pl.BlockSpec((1, 1, tb), lambda i, j: (i, 0, 0)),
        ],
        out_specs=pl.BlockSpec((1, 1, tb), lambda i, j: (i, 0, 0)),
        scratch_shapes=[pltpu.VMEM((1, tb), jnp.float32)],
        compiler_params=pltpu.CompilerParams(
            dimension_semantics=("parallel", "arbitrary"),
            vmem_limit_bytes=int(vmem_limit)),
        cost_estimate=cost,
    )(output1, output2, t_f32)

    losses = losses.reshape(b_padded)[:B]
    return jnp.mean(losses) if size_average else jnp.sum(losses)


def _reference(output1, output2, target, margin, eps=1e-9, size_average=True):
    output1 = output1.astype(jnp.float32)
    output2 = output2.astype(jnp.float32)
    distances = jnp.sum((output2 - output1) ** 2, axis=1)
    hinge = jnp.maximum(margin - jnp.sqrt(distances + eps), 0.0)
    t = target.astype(jnp.float32)
    losses = 0.5 * (t * distances + (1.0 - t) * hinge ** 2)
    return jnp.mean(losses) if size_average else jnp.sum(losses)


if __name__ == "__main__":
    key = jax.random.PRNGKey(0)
    k1, k2, k3 = jax.random.split(key, 3)
    margin = 1.0

    # Test 1: f32, mean reduction, single batch block.
    B, D = 8, 32
    o1 = jax.random.normal(k1, (B, D), dtype=jnp.float32)
    o2 = jax.random.normal(k2, (B, D), dtype=jnp.float32)
    t = jax.random.bernoulli(k3, 0.5, (B,)).astype(jnp.int32)
    loss = jax.block_until_ready(contrastive_loss(o1, o2, t, margin=margin))
    ref = _reference(o1, o2, t, margin)
    assert jnp.allclose(loss, ref, rtol=1e-5, atol=1e-6), (loss, ref)

    # Test 2: bf16 inputs (native-dtype DMA), B not a multiple of 8 (batch
    # padding path), 2 batch blocks, sum reduction.
    B2 = 13
    o1b = jax.random.normal(k1, (B2, D), dtype=jnp.bfloat16)
    o2b = jax.random.normal(k2, (B2, D), dtype=jnp.bfloat16)
    t2 = jax.random.bernoulli(k3, 0.5, (B2,)).astype(jnp.int32)
    loss2 = jax.block_until_ready(
        contrastive_loss(o1b, o2b, t2, margin=margin, size_average=False))
    ref2 = _reference(o1b, o2b, t2, margin, size_average=False)
    assert jnp.allclose(loss2, ref2, rtol=1e-3, atol=1e-3), (loss2, ref2)

    # Test 3: force the D-split ("arbitrary" axis + accumulator) path with a
    # small max_d_tile; D not a multiple of the tile (D padding path) and two
    # blocks on both grid axes.
    B3, D3 = 16, 192
    o1c = jax.random.normal(k1, (B3, D3), dtype=jnp.float32)
    o2c = jax.random.normal(k2, (B3, D3), dtype=jnp.float32)
    t3 = jax.random.bernoulli(k3, 0.5, (B3,)).astype(jnp.int32)
    loss3 = jax.block_until_ready(
        contrastive_loss(o1c, o2c, t3, margin=margin, max_d_tile=128))
    ref3 = _reference(o1c, o2c, t3, margin)
    assert jnp.allclose(loss3, ref3, rtol=1e-5, atol=1e-5), (loss3, ref3)

    print("KERNEL_OK")
</pallas_src>

<mosaic_0001>
module attributes {stable_mosaic.version = 11 : i64} {
  func.func @_contrastive_loss_kernel(%arg0: i32, %arg1: i32, %arg2: memref<8x32xf32, #tpu.memory_space<vmem>>, %arg3: memref<8x32xf32, #tpu.memory_space<vmem>>, %arg4: memref<1x1x8xf32, #tpu.memory_space<vmem>>, %arg5: memref<1x1x8xf32, #tpu.memory_space<vmem>>, %arg6: memref<1x8xf32, #tpu.memory_space<vmem>>) attributes {dimension_semantics = [#tpu.dimension_semantics<parallel>, #tpu.dimension_semantics<arbitrary>], iteration_bounds = array<i64: 1, 1>, scalar_prefetch = 0 : i64, scratch_operands = 1 : i64, tpu.core_type = #tpu.core_type<tc>, window_params = [{transform_indices = @transform_0, window_bounds = array<i64: 8, 32>}, {transform_indices = @transform_1, window_bounds = array<i64: 8, 32>}, {transform_indices = @transform_2, window_bounds = array<i64: 1, 1, 8>}, {transform_indices = @transform_3, window_bounds = array<i64: 1, 1, 8>}]} {
    %c0_i32 = arith.constant 0 : i32
    %0 = arith.cmpi eq, %arg1, %c0_i32 : i32
    %1 = arith.extui %0 : i1 to i32
    %c0_i32_0 = arith.constant 0 : i32
    %2 = arith.cmpi ne, %1, %c0_i32_0 : i32
    scf.if %2 {
      %cst_10 = arith.constant 0.000000e+00 : f32
      %16 = vector.broadcast %cst_10 : f32 to vector<1x8xf32>
      %c0_11 = arith.constant 0 : index
      %c0_12 = arith.constant 0 : index
      %17 = vector.load %arg6[%c0_11, %c0_12] : memref<1x8xf32, #tpu.memory_space<vmem>>, vector<1x8xf32>
      tpu.vector_store %arg6[%c0_11, %c0_12], %16 {strides = array<i32>} : memref<1x8xf32, #tpu.memory_space<vmem>>, vector<1x8xf32>,
    } else {
    }
    %c0 = arith.constant 0 : index
    %c0_1 = arith.constant 0 : index
    %3 = vector.load %arg2[%c0, %c0_1] : memref<8x32xf32, #tpu.memory_space<vmem>>, vector<8x32xf32>
    %c0_2 = arith.constant 0 : index
    %c0_3 = arith.constant 0 : index
    %4 = vector.load %arg3[%c0_2, %c0_3] : memref<8x32xf32, #tpu.memory_space<vmem>>, vector<8x32xf32>
    %5 = arith.subf %4, %3 : vector<8x32xf32>
    %6 = arith.mulf %5, %5 : vector<8x32xf32>
    %cst = arith.constant dense<0.000000e+00> : vector<8xf32>
    %7 = vector.multi_reduction <add>, %6, %cst [1] : vector<8x32xf32> to vector<8xf32>
    %8 = vector.shape_cast %7 : vector<8xf32> to vector<8x1xf32>
    %c0_4 = arith.constant 0 : index
    %c0_5 = arith.constant 0 : index
    %9 = vector.load %arg6[%c0_4, %c0_5] : memref<1x8xf32, #tpu.memory_space<vmem>>, vector<1x8xf32>
    %10 = tpu.transpose %8, [1, 0] : vector<8x1xf32> -> vector<1x8xf32>
    %11 = arith.addf %9, %10 : vector<1x8xf32>
    %c0_6 = arith.constant 0 : index
    %c0_7 = arith.constant 0 : index
    %12 = vector.load %arg6[%c0_6, %c0_7] : memref<1x8xf32, #tpu.memory_space<vmem>>, vector<1x8xf32>
    tpu.vector_store %arg6[%c0_6, %c0_7], %11 {strides = array<i32>} : memref<1x8xf32, #tpu.memory_space<vmem>>, vector<1x8xf32>,
    %c0_i32_8 = arith.constant 0 : i32
    %13 = arith.cmpi eq, %arg1, %c0_i32_8 : i32
    %14 = arith.extui %13 : i1 to i32
    %c0_i32_9 = arith.constant 0 : i32
    %15 = arith.cmpi ne, %14, %c0_i32_9 : i32
    scf.if %15 {
      %c0_10 = arith.constant 0 : index
      %c0_11 = arith.constant 0 : index
      %16 = vector.load %arg6[%c0_10, %c0_11] : memref<1x8xf32, #tpu.memory_space<vmem>>, vector<1x8xf32>
      %cst_12 = arith.constant 9.99999971E-10 : f32
      %17 = vector.broadcast %cst_12 : f32 to vector<1x8xf32>
      %18 = arith.addf %16, %17 : vector<1x8xf32>
      %19 = math.sqrt %18 : vector<1x8xf32>
      %cst_13 = arith.constant 1.000000e+00 : f32
      %20 = vector.broadcast %cst_13 : f32 to vector<1x8xf32>
      %21 = arith.subf %20, %19 : vector<1x8xf32>
      %cst_14 = arith.constant 0.000000e+00 : f32
      %22 = vector.broadcast %cst_14 : f32 to vector<1x8xf32>
      %23 = arith.maximumf %21, %22 : vector<1x8xf32>
      %c0_15 = arith.constant 0 : index
      %c0_16 = arith.constant 0 : index
      %c0_17 = arith.constant 0 : index
      %24 = vector.load %arg4[%c0_15, %c0_16, %c0_17] : memref<1x1x8xf32, #tpu.memory_space<vmem>>, vector<1x1x8xf32>
      %25 = vector.shape_cast %24 : vector<1x1x8xf32> to vector<1x8xf32>
      %26 = arith.mulf %25, %16 : vector<1x8xf32>
      %cst_18 = arith.constant 1.000000e+00 : f32
      %27 = vector.broadcast %cst_18 : f32 to vector<1x8xf32>
      %28 = arith.subf %27, %25 : vector<1x8xf32>
      %29 = arith.mulf %28, %23 : vector<1x8xf32>
      %30 = arith.mulf %29, %23 : vector<1x8xf32>
      %31 = arith.addf %26, %30 : vector<1x8xf32>
      %cst_19 = arith.constant 5.000000e-01 : f32
      %32 = vector.broadcast %cst_19 : f32 to vector<1x8xf32>
      %33 = arith.mulf %32, %31 : vector<1x8xf32>
      %c0_20 = arith.constant 0 : index
      %c0_21 = arith.constant 0 : index
      %c0_22 = arith.constant 0 : index
      %34 = vector.load %arg5[%c0_20, %c0_21, %c0_22] : memref<1x1x8xf32, #tpu.memory_space<vmem>>, vector<1x1x8xf32>
      %35 = vector.shape_cast %34 : vector<1x1x8xf32> to vector<1x8xf32>
      %36 = vector.shape_cast %33 : vector<1x8xf32> to vector<1x1x8xf32>
      tpu.vector_store %arg5[%c0_20, %c0_21, %c0_22], %36 {strides = array<i32>} : memref<1x1x8xf32, #tpu.memory_space<vmem>>, vector<1x1x8xf32>,
    } else {
    }
    return
  }
  func.func @transform_0(%arg0: i32, %arg1: i32) -> (i32, i32) {
    %c0_i32 = arith.constant 0 : i32
    return %arg0, %arg1 : i32, i32
  }
  func.func @transform_1(%arg0: i32, %arg1: i32) -> (i32, i32) {
    %c0_i32 = arith.constant 0 : i32
    return %arg0, %arg1 : i32, i32
  }
  func.func @transform_2(%arg0: i32, %arg1: i32) -> (i32, i32, i32) {
    %c0_i32 = arith.constant 0 : i32
    %c0_i32_0 = arith.constant 0 : i32
    %c0_i32_1 = arith.constant 0 : i32
    return %arg0, %c0_i32, %c0_i32_0 : i32, i32, i32
  }
  func.func @transform_3(%arg0: i32, %arg1: i32) -> (i32, i32, i32) {
    %c0_i32 = arith.constant 0 : i32
    %c0_i32_0 = arith.constant 0 : i32
    %c0_i32_1 = arith.constant 0 : i32
    return %arg0, %c0_i32, %c0_i32_0 : i32, i32, i32
  }
}

</mosaic_0001>

<llo_original>
// kernel: tpu_custom_call.1
$region0: #{tpu_custom_call.1}
  #allocation0 [shape = 'u32[]', space=smem, size = 0x4, offset = 0x4, fixed_abs, tag = 'smem constant byte address 0x4 - core index']
  #allocation1 [shape = 'u32[144,128]{1,0:T(1,128)}', space=vmem, size = 0x12000, scoped, tag = 'internal scratch']
  #allocation2 [shape = 'f32[1,8]{1,0:T(1,128)}', space=vmem, size = 0x200, scoped, tag = 'scratch operand']
  %s0 = inlined_call_operand.hbm [shape: f32[8,32], index: 0, kind: input, shape index: {}]
  %s1 = inlined_call_operand.hbm [shape: f32[8,32], index: 1, kind: input, shape index: {}]
  %s2 = inlined_call_operand.vmem [shape: f32[1,1,8], index: 2, kind: input, shape index: {}]
  %s3 = inlined_call_operand.hbm [shape: f32[1,1,8], index: 3, kind: output, shape index: {}]
  %s4 = sld [smem:[#allocation0]]
  $region38: #{tpu_custom_call.1} parent=0
    _
  %s6 = ssub.s32 1, %s4
  %s7 = scalar_select 0, %s6, %s4
  $region1: #{tpu_custom_call.1} parent=0
    #allocation3 [shape = 'u8[4096]{0}', space=vmem, size = 0x1000, scoped, tag = 'input window, operand 0, single buffered']
    #allocation4 [shape = 's32[1]{0}', space=sflag, size = 0x4, scoped, tag = 'scoped memory for tpu_custom_call.1']
    #allocation5 [shape = 's32[1]{0}', space=sflag, size = 0x4, scoped, tag = 'scoped memory for tpu_custom_call.1']
    #allocation6 [shape = 'u8[4096]{0}', space=vmem, size = 0x1000, scoped, tag = 'input window, operand 1, single buffered']
    #allocation7 [shape = 's32[1]{0}', space=sflag, size = 0x4, scoped, tag = 'scoped memory for tpu_custom_call.1']
    #allocation8 [shape = 'u8[512]{0}', space=vmem, size = 0x400, scoped, tag = 'output window, operand 0, single buffered']
    %8 = vsyncpa [#allocation4], 0
    %9 = vsyncpa [#allocation7], 0
    %10 = vsyncpa [#allocation5], 0
    // Predicated region
    $region2: #{tpu_custom_call.1} parent=1 // pred_check
      _
    $region3: #{tpu_custom_call.1} parent=1 // pred_check_branch
      %12 = sbr.rel (0) target = $region5
    $region4: #{tpu_custom_call.1} parent=1 // pred_region
      %s14 = ssub.s32 128, 128
      %15 = vsyncadd [#allocation4], %s14
      %s17 = sshll.u32 [#allocation3], 4
      %s18 = int_to_ptr.vmem [resolvable:$true] %s17
      %20 = dma.hbm_to_vmem [thread:$0]  %s0, 128, %s18, [#allocation4]
    $region5: #{tpu_custom_call.1} parent=1 // pred_fallthru
      _
    // Predicated region
    $region6: #{tpu_custom_call.1} parent=1 // pred_check
      _
    $region7: #{tpu_custom_call.1} parent=1 // pred_check_branch
      %22 = sbr.rel (0) target = $region9
    $region8: #{tpu_custom_call.1} parent=1 // pred_region
      %s24 = ssub.s32 128, 128
      %25 = vsyncadd [#allocation7], %s24
      %s27 = sshll.u32 [#allocation6], 4
      %s28 = int_to_ptr.vmem [resolvable:$true] %s27
      %30 = dma.hbm_to_vmem [thread:$0]  %s1, 128, %s28, [#allocation7]
    $region9: #{tpu_custom_call.1} parent=1 // pred_fallthru
      _
    // Predicated region
    $region10: #{tpu_custom_call.1} parent=1 // pred_check
      _
    $region11: #{tpu_custom_call.1} parent=1 // pred_check_branch
      %32 = sbr.rel (0) target = $region13
    $region12: #{tpu_custom_call.1} parent=1 // pred_region
      _
    $region13: #{tpu_custom_call.1} parent=1 // pred_fallthru
      _
    // Predicated region
    $region14: #{tpu_custom_call.1} parent=1 // pred_check
      _
    $region15: #{tpu_custom_call.1} parent=1 // pred_check_branch
      %34 = sbr.rel (0) target = $region17
    $region16: #{tpu_custom_call.1} parent=1 // pred_region
      %35 = dma.done [#allocation4], 128
    $region17: #{tpu_custom_call.1} parent=1 // pred_fallthru
      _
    // Predicated region
    $region18: #{tpu_custom_call.1} parent=1 // pred_check
      _
    $region19: #{tpu_custom_call.1} parent=1 // pred_check_branch
      %37 = sbr.rel (0) target = $region21
    $region20: #{tpu_custom_call.1} parent=1 // pred_region
      %38 = dma.done [#allocation7], 128
    $region21: #{tpu_custom_call.1} parent=1 // pred_fallthru
      _
    %p39 = scmp.eq.s32.totalorder 0, 0
    // Predicated region
    $region22: #{tpu_custom_call.1} parent=1 // pred_check
      %p40 = pneg %p39
    $region23: #{tpu_custom_call.1} parent=1 // pred_check_branch
      %42 = sbr.rel (%p40) target = $region25
    $region24: #{tpu_custom_call.1} parent=1 // pred_region
      %vm43 = vcmask 57344
      %44 = vst.msk [vmem:[#allocation2] sm:$0x1] %vm43, 0.0
    $region25: #{tpu_custom_call.1} parent=1 // pred_fallthru
      _
    %v45 = vld [vmem:[#allocation3] sm:$0xff]
    %v46 = vld [vmem:[#allocation6] sm:$0xff]
    %v47 = vsub.f32 %v46, %v45
    %v48 = vmul.f32 %v47, %v47
    %vm49 = vcmask 261120
    %v50 = vsel %vm49, %v48, 0.0
    %51 = vadd.xlane.f32.xlu0 %v50
    %v52 = vpop.xlane.xlu0 %51
    %v53 = vld [vmem:[#allocation2] sm:$0x1]
    %54 = vxpose.xlu0.b32.start [1/16] %v52, 128
    %55 = vxpose.xlu0.b32.cont [2/16] 0.0, 128
    %56 = vxpose.xlu0.b32.cont [3/16] 0.0, 128
    %57 = vxpose.xlu0.b32.cont [4/16] 0.0, 128
    %58 = vxpose.xlu0.b32.cont [5/16] 0.0, 128
    %59 = vxpose.xlu0.b32.cont [6/16] 0.0, 128
    %60 = vxpose.xlu0.b32.cont [7/16] 0.0, 128
    %61 = vxpose.xlu0.b32.cont [8/16] 0.0, 128
    %62 = vxpose.xlu0.b32.cont [9/16] 0.0, 128
    %63 = vxpose.xlu0.b32.cont [10/16] 0.0, 128
    %64 = vxpose.xlu0.b32.cont [11/16] 0.0, 128
    %65 = vxpose.xlu0.b32.cont [12/16] 0.0, 128
    %66 = vxpose.xlu0.b32.cont [13/16] 0.0, 128
    %67 = vxpose.xlu0.b32.cont [14/16] 0.0, 128
    %68 = vxpose.xlu0.b32.cont [15/16] 0.0, 128
    %69 = vxpose.xlu0.b32.end [16/16] 0.0, 128
    %v70 = vpop.trf.xlu0
    %v71 = vpop.trf.xlu0
    %v72 = vpop.trf.xlu0
    %v73 = vpop.trf.xlu0
    %v74 = vpop.trf.xlu0
    %v75 = vpop.trf.xlu0
    %v76 = vpop.trf.xlu0
    %v77 = vpop.trf.xlu0
    %v78 = vpop.trf.xlu0
    %v79 = vpop.trf.xlu0
    %v80 = vpop.trf.xlu0
    %v81 = vpop.trf.xlu0
    %v82 = vpop.trf.xlu0
    %v83 = vpop.trf.xlu0
    %v84 = vpop.trf.xlu0
    %v85 = vpop.trf.xlu0
    %v86 = vadd.f32 %v53, %v70
    %vm87 = vcmask 57344
    %88 = vst.msk [vmem:[#allocation2] sm:$0x1] %vm87, %v86
    // Predicated region
    $region26: #{tpu_custom_call.1} parent=1 // pred_check
      %p89 = pneg %p39
    $region27: #{tpu_custom_call.1} parent=1 // pred_check_branch
      %91 = sbr.rel (%p89) target = $region29
    $region28: #{tpu_custom_call.1} parent=1 // pred_region
      %v92 = vld [vmem:[#allocation2] sm:$0x1]
      %v93 = vadd.f32 %v92, 1e-09
      %v94 = vrsqrt.pop %v93
      %v95 = vmul.f32 %v93, %v94
      %vm96 = vcmp.eq.f32.partialorder %v93, inf
      %v97 = vsel %vm96, %v93, %v95
      %vm98 = vcmp.eq.f32.partialorder %v93, 0.0
      %v99 = vand.u32 %v93, 2147483648
      %v100 = vsel %vm98, %v99, %v97
      %v101 = vsub.f32 1.0, %v100
      %v102 = vmax.f32 %v101, 0.0
      %v103 = vld [vmem:[%s2] sm:$0x1]
      %v104 = vmul.f32 %v103, %v92
      %v105 = vsub.f32 1.0, %v103
      %v106 = vmul.f32 %v105, %v102
      %v107 = vmul.f32 %v106, %v102
      %v108 = vadd.f32 %v104, %v107
      %v109 = vmul.f32 %v108, 0.5
      %110 = vst.msk [vmem:[#allocation8] sm:$0x1] %vm87, %v109
    $region29: #{tpu_custom_call.1} parent=1 // pred_fallthru
      _
    // Predicated region
    $region30: #{tpu_custom_call.1} parent=1 // pred_check
      _
    $region31: #{tpu_custom_call.1} parent=1 // pred_check_branch
      %112 = sbr.rel (0) target = $region33
    $region32: #{tpu_custom_call.1} parent=1 // pred_region
      %s114 = ssub.s32 16, 16
      %115 = vsyncadd [#allocation5], %s114
      %s117 = sshll.u32 [#allocation8], 4
      %s118 = int_to_ptr.vmem [resolvable:$true] %s117
      %120 = dma.vmem_to_hbm [thread:$0]  %s118, 16, %s3, [#allocation5]
    $region33: #{tpu_custom_call.1} parent=1 // pred_fallthru
      _
    // Predicated region
    $region34: #{tpu_custom_call.1} parent=1 // pred_check
      _
    $region35: #{tpu_custom_call.1} parent=1 // pred_check_branch
      %122 = sbr.rel (0) target = $region37
    $region36: #{tpu_custom_call.1} parent=1 // pred_region
      %123 = dma.done [#allocation5], 16
    $region37: #{tpu_custom_call.1} parent=1 // pred_fallthru
      _
    %124 = vsyncpa [#allocation4], 1
    %125 = vsyncpa [#allocation7], 1
    %126 = vsyncpa [#allocation5], 1

</llo_original>
